<compile_context>
chip_gen: v7x
topology: tpu7x:2x2x1
jax: 0.10.0
libtpu: 0.0.40
codegen_flags: <defaults>
</compile_context>

<pallas_src>
import jax
import jax.numpy as jnp
from jax import lax
from jax.experimental import pallas as pl
from jax.experimental.pallas import tpu as pltpu

K = 3  # kernel size == stride (PyTorch default: stride = kernel_size)


def maxpool3x3_kernel(x_ref, o_ref):
    """x_ref: (bho, K, Wo, K, bp) block; o_ref: (bho, Wo, 1, bp) block.

    Layout: last dim bp = planes (lanes), second-to-last K = kernel cols
    (sublanes), everything pooled over is either a leading dim (kernel rows)
    or the tiny size-3 sublane dim.
    """
    x = x_ref[...]                       # (bho, K, Wo, K, bp)

    # Kernel-row reduction: leading-dim slices -> pure elementwise VPU max.
    m = x[:, 0]                          # (bho, Wo, K, bp)
    for a in range(1, K):
        m = jnp.maximum(m, x[:, a])

    # Kernel-col reduction: size-3 sublane reduce.
    o_ref[...] = jnp.max(m, axis=2, keepdims=True).astype(o_ref.dtype)


def xiong_pool(x):
    """MaxPool2d(kernel_size=3, stride=3, ceil_mode=False) over NCHW input."""
    N, C, H, W = x.shape
    Ho = (H - K) // K + 1
    Wo = (W - K) // K + 1
    P = N * C
    Hc, Wc = Ho * K, Wo * K

    # Layout plumbing in XLA (cheap relative to the mem-bound kernel):
    # crop trailing rows/cols (ceil_mode=False), planes -> minor/lane axis,
    # then a free reshape splitting each pooled axis into (out, K).
    xt = jnp.transpose(x[:, :, :Hc, :Wc].reshape(P, Hc, Wc), (1, 2, 0))  # (Hc, Wc, P)
    x5 = xt.reshape(Ho, K, Wo, K, P)                                     # (Ho,K,Wo,K,P)

    # ---- block sizing ----
    itemsize = jnp.dtype(x.dtype).itemsize
    # Planes per block (lane axis): whole P unless it splits cleanly into
    # 128-lane multiples (then use up to 512 lanes per block).
    if P % 128 == 0:
        bp = 128
        while bp * 2 <= 512 and P % (bp * 2) == 0:
            bp *= 2
    else:
        bp = P
    # Output-row groups per block: keep the *padded* input block <= ~4 MiB
    # (lane dim pads to 128, sublane dim K pads to 8).
    lane_pad = -(-bp // 128) * 128
    sub_pad = -(-K // 8) * 8
    row_bytes = K * Wo * sub_pad * lane_pad * itemsize
    bho = max(1, min(Ho, (4 * 1024 * 1024) // max(row_bytes, 1)))
    while Ho % bho:
        bho -= 1

    grid = (Ho // bho, P // bp)

    out5 = pl.pallas_call(
        maxpool3x3_kernel,
        out_shape=jax.ShapeDtypeStruct((Ho, Wo, 1, P), x.dtype),
        grid=grid,
        in_specs=[pl.BlockSpec((bho, K, Wo, K, bp),
                               lambda i, c: (i, 0, 0, 0, c))],
        out_specs=pl.BlockSpec((bho, Wo, 1, bp),
                               lambda i, c: (i, 0, 0, c)),
        compiler_params=pltpu.CompilerParams(
            dimension_semantics=("parallel", "parallel"),
            vmem_limit_bytes=32 * 1024 * 1024),
    )(x5)

    # (Ho, Wo, 1, P) -> (N, C, Ho, Wo)
    return jnp.transpose(out5.reshape(Ho, Wo, P), (2, 0, 1)).reshape(N, C, Ho, Wo)


if __name__ == "__main__":
    key = jax.random.PRNGKey(0)
    x = jax.random.normal(key, (2, 4, 16, 16), dtype=jnp.float32)

    y = jax.block_until_ready(xiong_pool(x))

    # Pure-JAX reference (same semantics as torch.nn.MaxPool2d(3)).
    ref = lax.reduce_window(
        x, -jnp.inf, lax.max,
        window_dimensions=(1, 1, K, K),
        window_strides=(1, 1, K, K),
        padding="VALID",
    )

    assert y.shape == (2, 4, 5, 5), y.shape
    assert jnp.allclose(y, ref), "mismatch vs reference max-pool"
    print("KERNEL_OK")
</pallas_src>

<mosaic_0001>
module attributes {stable_mosaic.version = 11 : i64} {
  func.func @maxpool3x3_kernel(%arg0: i32, %arg1: i32, %arg2: memref<5x3x5x3x8xf32, #tpu.memory_space<vmem>>, %arg3: memref<5x5x1x8xf32, #tpu.memory_space<vmem>>) attributes {dimension_semantics = [#tpu.dimension_semantics<parallel>, #tpu.dimension_semantics<parallel>], iteration_bounds = array<i64: 1, 1>, scalar_prefetch = 0 : i64, scratch_operands = 0 : i64, tpu.core_type = #tpu.core_type<tc>, window_params = [{transform_indices = @transform_0, window_bounds = array<i64: 5, 3, 5, 3, 8>}, {transform_indices = @transform_1, window_bounds = array<i64: 5, 5, 1, 8>}]} {
    %c0 = arith.constant 0 : index
    %c0_0 = arith.constant 0 : index
    %c0_1 = arith.constant 0 : index
    %c0_2 = arith.constant 0 : index
    %c0_3 = arith.constant 0 : index
    %0 = vector.load %arg2[%c0, %c0_0, %c0_1, %c0_2, %c0_3] : memref<5x3x5x3x8xf32, #tpu.memory_space<vmem>>, vector<5x3x5x3x8xf32>
    %1 = vector.extract_strided_slice %0 {offsets = [0, 0, 0, 0, 0], sizes = [5, 1, 5, 3, 8], strides = [1, 1, 1, 1, 1]} : vector<5x3x5x3x8xf32> to vector<5x1x5x3x8xf32>
    %2 = vector.shape_cast %1 : vector<5x1x5x3x8xf32> to vector<5x5x3x8xf32>
    %3 = vector.extract_strided_slice %0 {offsets = [0, 1, 0, 0, 0], sizes = [5, 1, 5, 3, 8], strides = [1, 1, 1, 1, 1]} : vector<5x3x5x3x8xf32> to vector<5x1x5x3x8xf32>
    %4 = vector.shape_cast %3 : vector<5x1x5x3x8xf32> to vector<5x5x3x8xf32>
    %5 = arith.maximumf %2, %4 : vector<5x5x3x8xf32>
    %6 = vector.extract_strided_slice %0 {offsets = [0, 2, 0, 0, 0], sizes = [5, 1, 5, 3, 8], strides = [1, 1, 1, 1, 1]} : vector<5x3x5x3x8xf32> to vector<5x1x5x3x8xf32>
    %7 = vector.shape_cast %6 : vector<5x1x5x3x8xf32> to vector<5x5x3x8xf32>
    %8 = arith.maximumf %5, %7 : vector<5x5x3x8xf32>
    %cst = arith.constant dense<0xFF800000> : vector<5x5x8xf32>
    %9 = vector.multi_reduction <maximumf>, %8, %cst [2] : vector<5x5x3x8xf32> to vector<5x5x8xf32>
    %10 = vector.shape_cast %9 : vector<5x5x8xf32> to vector<5x5x1x8xf32>
    %c0_4 = arith.constant 0 : index
    %c0_5 = arith.constant 0 : index
    %c0_6 = arith.constant 0 : index
    %c0_7 = arith.constant 0 : index
    %11 = vector.load %arg3[%c0_4, %c0_5, %c0_6, %c0_7] : memref<5x5x1x8xf32, #tpu.memory_space<vmem>>, vector<5x5x1x8xf32>
    tpu.vector_store %arg3[%c0_4, %c0_5, %c0_6, %c0_7], %10 {strides = array<i32>} : memref<5x5x1x8xf32, #tpu.memory_space<vmem>>, vector<5x5x1x8xf32>,
    return
  }
  func.func @transform_0(%arg0: i32, %arg1: i32) -> (i32, i32, i32, i32, i32) {
    %c0_i32 = arith.constant 0 : i32
    %c0_i32_0 = arith.constant 0 : i32
    %c0_i32_1 = arith.constant 0 : i32
    %c0_i32_2 = arith.constant 0 : i32
    return %arg0, %c0_i32, %c0_i32_0, %c0_i32_1, %arg1 : i32, i32, i32, i32, i32
  }
  func.func @transform_1(%arg0: i32, %arg1: i32) -> (i32, i32, i32, i32) {
    %c0_i32 = arith.constant 0 : i32
    %c0_i32_0 = arith.constant 0 : i32
    %c0_i32_1 = arith.constant 0 : i32
    return %arg0, %c0_i32, %c0_i32_0, %arg1 : i32, i32, i32, i32
  }
}

</mosaic_0001>

<llo_original>
// kernel: tpu_custom_call.1
$region0: #{tpu_custom_call.1}
  #allocation0 [shape = 'u32[]', space=smem, size = 0x4, offset = 0x4, fixed_abs, tag = 'smem constant byte address 0x4 - core index']
  #allocation1 [shape = 'u32[144,128]{1,0:T(1,128)}', space=vmem, size = 0x12000, scoped, tag = 'internal scratch']
  %s0 = inlined_call_operand.hbm [shape: f32[5,3,5,3,8], index: 0, kind: input, shape index: {}]
  %s1 = inlined_call_operand.hbm [shape: f32[5,5,1,8], index: 1, kind: output, shape index: {}]
  %s2 = sld [smem:[#allocation0]]
  $region18: #{tpu_custom_call.1} parent=0
    _
  %s4 = ssub.s32 1, %s2
  %s5 = scalar_select 0, %s4, %s2
  $region1: #{tpu_custom_call.1} parent=0
    #allocation2 [shape = 'u8[153600]{0}', space=vmem, size = 0x25800, scoped, tag = 'input window, operand 0, single buffered']
    #allocation3 [shape = 's32[1]{0}', space=sflag, size = 0x4, scoped, tag = 'scoped memory for tpu_custom_call.1']
    #allocation4 [shape = 's32[1]{0}', space=sflag, size = 0x4, scoped, tag = 'scoped memory for tpu_custom_call.1']
    #allocation5 [shape = 'u8[12800]{0}', space=vmem, size = 0x3400, scoped, tag = 'output window, operand 0, single buffered']
    %6 = vsyncpa [#allocation3], 0
    %7 = vsyncpa [#allocation4], 0
    // Predicated region
    $region2: #{tpu_custom_call.1} parent=1 // pred_check
      _
    $region3: #{tpu_custom_call.1} parent=1 // pred_check_branch
      %9 = sbr.rel (0) target = $region5
    $region4: #{tpu_custom_call.1} parent=1 // pred_region
      %s11 = ssub.s32 4800, 4800
      %12 = vsyncadd [#allocation3], %s11
      %s13 = sshll.u32 [#allocation2], 4
      %s14 = int_to_ptr.vmem [resolvable:$true] %s13
      %19 = dma.hbm_to_vmem [thread:$0]  %s0, 4800, %s14, [#allocation3], 64, 64, 4
    $region5: #{tpu_custom_call.1} parent=1 // pred_fallthru
      _
    // Predicated region
    $region6: #{tpu_custom_call.1} parent=1 // pred_check
      _
    $region7: #{tpu_custom_call.1} parent=1 // pred_check_branch
      %21 = sbr.rel (0) target = $region9
    $region8: #{tpu_custom_call.1} parent=1 // pred_region
      %22 = dma.done [#allocation3], 4800
    $region9: #{tpu_custom_call.1} parent=1 // pred_fallthru
      _
    %v23 = vld [vmem:[#allocation2] sm:$0x7]
    %v24 = vld [vmem:[#allocation2 + $0x4] sm:$0x7]
    %v25 = vld [vmem:[#allocation2 + $0x8] sm:$0x7]
    %v26 = vld [vmem:[#allocation2 + $0xc] sm:$0x7]
    %v27 = vld [vmem:[#allocation2 + $0x10] sm:$0x7]
    %v28 = vld [vmem:[#allocation2 + $0x14] sm:$0x7]
    %v29 = vld [vmem:[#allocation2 + $0x18] sm:$0x7]
    %v30 = vld [vmem:[#allocation2 + $0x1c] sm:$0x7]
    %v31 = vld [vmem:[#allocation2 + $0x20] sm:$0x7]
    %v32 = vld [vmem:[#allocation2 + $0x24] sm:$0x7]
    %v33 = vld [vmem:[#allocation2 + $0x28] sm:$0x7]
    %v34 = vld [vmem:[#allocation2 + $0x2c] sm:$0x7]
    %v35 = vld [vmem:[#allocation2 + $0x30] sm:$0x7]
    %v36 = vld [vmem:[#allocation2 + $0x34] sm:$0x7]
    %v37 = vld [vmem:[#allocation2 + $0x38] sm:$0x7]
    %v38 = vld [vmem:[#allocation2 + $0x3c] sm:$0x7]
    %v39 = vld [vmem:[#allocation2 + $0x40] sm:$0x7]
    %v40 = vld [vmem:[#allocation2 + $0x44] sm:$0x7]
    %v41 = vld [vmem:[#allocation2 + $0x48] sm:$0x7]
    %v42 = vld [vmem:[#allocation2 + $0x4c] sm:$0x7]
    %v43 = vld [vmem:[#allocation2 + $0x50] sm:$0x7]
    %v44 = vld [vmem:[#allocation2 + $0x54] sm:$0x7]
    %v45 = vld [vmem:[#allocation2 + $0x58] sm:$0x7]
    %v46 = vld [vmem:[#allocation2 + $0x5c] sm:$0x7]
    %v47 = vld [vmem:[#allocation2 + $0x60] sm:$0x7]
    %v48 = vld [vmem:[#allocation2 + $0x64] sm:$0x7]
    %v49 = vld [vmem:[#allocation2 + $0x68] sm:$0x7]
    %v50 = vld [vmem:[#allocation2 + $0x6c] sm:$0x7]
    %v51 = vld [vmem:[#allocation2 + $0x70] sm:$0x7]
    %v52 = vld [vmem:[#allocation2 + $0x74] sm:$0x7]
    %v53 = vld [vmem:[#allocation2 + $0x78] sm:$0x7]
    %v54 = vld [vmem:[#allocation2 + $0x7c] sm:$0x7]
    %v55 = vld [vmem:[#allocation2 + $0x80] sm:$0x7]
    %v56 = vld [vmem:[#allocation2 + $0x84] sm:$0x7]
    %v57 = vld [vmem:[#allocation2 + $0x88] sm:$0x7]
    %v58 = vld [vmem:[#allocation2 + $0x8c] sm:$0x7]
    %v59 = vld [vmem:[#allocation2 + $0x90] sm:$0x7]
    %v60 = vld [vmem:[#allocation2 + $0x94] sm:$0x7]
    %v61 = vld [vmem:[#allocation2 + $0x98] sm:$0x7]
    %v62 = vld [vmem:[#allocation2 + $0x9c] sm:$0x7]
    %v63 = vld [vmem:[#allocation2 + $0xa0] sm:$0x7]
    %v64 = vld [vmem:[#allocation2 + $0xa4] sm:$0x7]
    %v65 = vld [vmem:[#allocation2 + $0xa8] sm:$0x7]
    %v66 = vld [vmem:[#allocation2 + $0xac] sm:$0x7]
    %v67 = vld [vmem:[#allocation2 + $0xb0] sm:$0x7]
    %v68 = vld [vmem:[#allocation2 + $0xb4] sm:$0x7]
    %v69 = vld [vmem:[#allocation2 + $0xb8] sm:$0x7]
    %v70 = vld [vmem:[#allocation2 + $0xbc] sm:$0x7]
    %v71 = vld [vmem:[#allocation2 + $0xc0] sm:$0x7]
    %v72 = vld [vmem:[#allocation2 + $0xc4] sm:$0x7]
    %v73 = vld [vmem:[#allocation2 + $0xc8] sm:$0x7]
    %v74 = vld [vmem:[#allocation2 + $0xcc] sm:$0x7]
    %v75 = vld [vmem:[#allocation2 + $0xd0] sm:$0x7]
    %v76 = vld [vmem:[#allocation2 + $0xd4] sm:$0x7]
    %v77 = vld [vmem:[#allocation2 + $0xd8] sm:$0x7]
    %v78 = vld [vmem:[#allocation2 + $0xdc] sm:$0x7]
    %v79 = vld [vmem:[#allocation2 + $0xe0] sm:$0x7]
    %v80 = vld [vmem:[#allocation2 + $0xe4] sm:$0x7]
    %v81 = vld [vmem:[#allocation2 + $0xe8] sm:$0x7]
    %v82 = vld [vmem:[#allocation2 + $0xec] sm:$0x7]
    %v83 = vld [vmem:[#allocation2 + $0xf0] sm:$0x7]
    %v84 = vld [vmem:[#allocation2 + $0xf4] sm:$0x7]
    %v85 = vld [vmem:[#allocation2 + $0xf8] sm:$0x7]
    %v86 = vld [vmem:[#allocation2 + $0xfc] sm:$0x7]
    %v87 = vld [vmem:[#allocation2 + $0x100] sm:$0x7]
    %v88 = vld [vmem:[#allocation2 + $0x104] sm:$0x7]
    %v89 = vld [vmem:[#allocation2 + $0x108] sm:$0x7]
    %v90 = vld [vmem:[#allocation2 + $0x10c] sm:$0x7]
    %v91 = vld [vmem:[#allocation2 + $0x110] sm:$0x7]
    %v92 = vld [vmem:[#allocation2 + $0x114] sm:$0x7]
    %v93 = vld [vmem:[#allocation2 + $0x118] sm:$0x7]
    %v94 = vld [vmem:[#allocation2 + $0x11c] sm:$0x7]
    %v95 = vld [vmem:[#allocation2 + $0x120] sm:$0x7]
    %v96 = vld [vmem:[#allocation2 + $0x124] sm:$0x7]
    %v97 = vld [vmem:[#allocation2 + $0x128] sm:$0x7]
    %v98 = vmax.f32 %v23, %v28
    %v99 = vmax.f32 %v24, %v29
    %v100 = vmax.f32 %v25, %v30
    %v101 = vmax.f32 %v26, %v31
    %v102 = vmax.f32 %v27, %v32
    %v103 = vmax.f32 %v38, %v43
    %v104 = vmax.f32 %v39, %v44
    %v105 = vmax.f32 %v40, %v45
    %v106 = vmax.f32 %v41, %v46
    %v107 = vmax.f32 %v42, %v47
    %v108 = vmax.f32 %v53, %v58
    %v109 = vmax.f32 %v54, %v59
    %v110 = vmax.f32 %v55, %v60
    %v111 = vmax.f32 %v56, %v61
    %v112 = vmax.f32 %v57, %v62
    %v113 = vmax.f32 %v68, %v73
    %v114 = vmax.f32 %v69, %v74
    %v115 = vmax.f32 %v70, %v75
    %v116 = vmax.f32 %v71, %v76
    %v117 = vmax.f32 %v72, %v77
    %v118 = vmax.f32 %v83, %v88
    %v119 = vmax.f32 %v84, %v89
    %v120 = vmax.f32 %v85, %v90
    %v121 = vmax.f32 %v86, %v91
    %v122 = vmax.f32 %v87, %v92
    %v123 = vmax.f32 %v98, %v33
    %v124 = vmax.f32 %v99, %v34
    %v125 = vmax.f32 %v100, %v35
    %v126 = vmax.f32 %v101, %v36
    %v127 = vmax.f32 %v102, %v37
    %v128 = vmax.f32 %v103, %v48
    %v129 = vmax.f32 %v104, %v49
    %v130 = vmax.f32 %v105, %v50
    %v131 = vmax.f32 %v106, %v51
    %v132 = vmax.f32 %v107, %v52
    %v133 = vmax.f32 %v108, %v63
    %v134 = vmax.f32 %v109, %v64
    %v135 = vmax.f32 %v110, %v65
    %v136 = vmax.f32 %v111, %v66
    %v137 = vmax.f32 %v112, %v67
    %v138 = vmax.f32 %v113, %v78
    %v139 = vmax.f32 %v114, %v79
    %v140 = vmax.f32 %v115, %v80
    %v141 = vmax.f32 %v116, %v81
    %v142 = vmax.f32 %v117, %v82
    %v143 = vmax.f32 %v118, %v93
    %v144 = vmax.f32 %v119, %v94
    %v145 = vmax.f32 %v120, %v95
    %v146 = vmax.f32 %v121, %v96
    %v147 = vmax.f32 %v122, %v97
    %vm148 = vcmask 59392
    %v149 = vsel %vm148, %v123, -inf
    %v150 = vrot.slane %v149, 4
    %v151 = vmax.f32 %v149, %v150
    %v152 = vrot.slane %v151, 2
    %v153 = vmax.f32 %v151, %v152
    %v154 = vrot.slane %v153, 1
    %v155 = vmax.f32 %v153, %v154
    %v156 = vsel %vm148, %v124, -inf
    %v157 = vrot.slane %v156, 4
    %v158 = vmax.f32 %v156, %v157
    %v159 = vrot.slane %v158, 2
    %v160 = vmax.f32 %v158, %v159
    %v161 = vrot.slane %v160, 1
    %v162 = vmax.f32 %v160, %v161
    %v163 = vsel %vm148, %v125, -inf
    %v164 = vrot.slane %v163, 4
    %v165 = vmax.f32 %v163, %v164
    %v166 = vrot.slane %v165, 2
    %v167 = vmax.f32 %v165, %v166
    %v168 = vrot.slane %v167, 1
    %v169 = vmax.f32 %v167, %v168
    %v170 = vsel %vm148, %v126, -inf
    %v171 = vrot.slane %v170, 4
    %v172 = vmax.f32 %v170, %v171
    %v173 = vrot.slane %v172, 2
    %v174 = vmax.f32 %v172, %v173
    %v175 = vrot.slane %v174, 1
    %v176 = vmax.f32 %v174, %v175
    %v177 = vsel %vm148, %v127, -inf
    %v178 = vrot.slane %v177, 4
    %v179 = vmax.f32 %v177, %v178
    %v180 = vrot.slane %v179, 2
    %v181 = vmax.f32 %v179, %v180
    %v182 = vrot.slane %v181, 1
    %v183 = vmax.f32 %v181, %v182
    %v184 = vsel %vm148, %v128, -inf
    %v185 = vrot.slane %v184, 4
    %v186 = vmax.f32 %v184, %v185
    %v187 = vrot.slane %v186, 2
    %v188 = vmax.f32 %v186, %v187
    %v189 = vrot.slane %v188, 1
    %v190 = vmax.f32 %v188, %v189
    %v191 = vsel %vm148, %v129, -inf
    %v192 = vrot.slane %v191, 4
    %v193 = vmax.f32 %v191, %v192
    %v194 = vrot.slane %v193, 2
    %v195 = vmax.f32 %v193, %v194
    %v196 = vrot.slane %v195, 1
    %v197 = vmax.f32 %v195, %v196
    %v198 = vsel %vm148, %v130, -inf
    %v199 = vrot.slane %v198, 4
    %v200 = vmax.f32 %v198, %v199
    %v201 = vrot.slane %v200, 2
    %v202 = vmax.f32 %v200, %v201
    %v203 = vrot.slane %v202, 1
    %v204 = vmax.f32 %v202, %v203
    %v205 = vsel %vm148, %v131, -inf
    %v206 = vrot.slane %v205, 4
    %v207 = vmax.f32 %v205, %v206
    %v208 = vrot.slane %v207, 2
    %v209 = vmax.f32 %v207, %v208
    %v210 = vrot.slane %v209, 1
    %v211 = vmax.f32 %v209, %v210
    %v212 = vsel %vm148, %v132, -inf
    %v213 = vrot.slane %v212, 4
    %v214 = vmax.f32 %v212, %v213
    %v215 = vrot.slane %v214, 2
    %v216 = vmax.f32 %v214, %v215
    %v217 = vrot.slane %v216, 1
    %v218 = vmax.f32 %v216, %v217
    %v219 = vsel %vm148, %v133, -inf
    %v220 = vrot.slane %v219, 4
    %v221 = vmax.f32 %v219, %v220
    %v222 = vrot.slane %v221, 2
    %v223 = vmax.f32 %v221, %v222
    %v224 = vrot.slane %v223, 1
    %v225 = vmax.f32 %v223, %v224
    %v226 = vsel %vm148, %v134, -inf
    %v227 = vrot.slane %v226, 4
    %v228 = vmax.f32 %v226, %v227
    %v229 = vrot.slane %v228, 2
    %v230 = vmax.f32 %v228, %v229
    %v231 = vrot.slane %v230, 1
    %v232 = vmax.f32 %v230, %v231
    %v233 = vsel %vm148, %v135, -inf
    %v234 = vrot.slane %v233, 4
    %v235 = vmax.f32 %v233, %v234
    %v236 = vrot.slane %v235, 2
    %v237 = vmax.f32 %v235, %v236
    %v238 = vrot.slane %v237, 1
    %v239 = vmax.f32 %v237, %v238
    %v240 = vsel %vm148, %v136, -inf
    %v241 = vrot.slane %v240, 4
    %v242 = vmax.f32 %v240, %v241
    %v243 = vrot.slane %v242, 2
    %v244 = vmax.f32 %v242, %v243
    %v245 = vrot.slane %v244, 1
    %v246 = vmax.f32 %v244, %v245
    %v247 = vsel %vm148, %v137, -inf
    %v248 = vrot.slane %v247, 4
    %v249 = vmax.f32 %v247, %v248
    %v250 = vrot.slane %v249, 2
    %v251 = vmax.f32 %v249, %v250
    %v252 = vrot.slane %v251, 1
    %v253 = vmax.f32 %v251, %v252
    %v254 = vsel %vm148, %v138, -inf
    %v255 = vrot.slane %v254, 4
    %v256 = vmax.f32 %v254, %v255
    %v257 = vrot.slane %v256, 2
    %v258 = vmax.f32 %v256, %v257
    %v259 = vrot.slane %v258, 1
    %v260 = vmax.f32 %v258, %v259
    %v261 = vsel %vm148, %v139, -inf
    %v262 = vrot.slane %v261, 4
    %v263 = vmax.f32 %v261, %v262
    %v264 = vrot.slane %v263, 2
    %v265 = vmax.f32 %v263, %v264
    %v266 = vrot.slane %v265, 1
    %v267 = vmax.f32 %v265, %v266
    %v268 = vsel %vm148, %v140, -inf
    %v269 = vrot.slane %v268, 4
    %v270 = vmax.f32 %v268, %v269
    %v271 = vrot.slane %v270, 2
    %v272 = vmax.f32 %v270, %v271
    %v273 = vrot.slane %v272, 1
    %v274 = vmax.f32 %v272, %v273
    %v275 = vsel %vm148, %v141, -inf
    %v276 = vrot.slane %v275, 4
    %v277 = vmax.f32 %v275, %v276
    %v278 = vrot.slane %v277, 2
    %v279 = vmax.f32 %v277, %v278
    %v280 = vrot.slane %v279, 1
    %v281 = vmax.f32 %v279, %v280
    %v282 = vsel %vm148, %v142, -inf
    %v283 = vrot.slane %v282, 4
    %v284 = vmax.f32 %v282, %v283
    %v285 = vrot.slane %v284, 2
    %v286 = vmax.f32 %v284, %v285
    %v287 = vrot.slane %v286, 1
    %v288 = vmax.f32 %v286, %v287
    %v289 = vsel %vm148, %v143, -inf
    %v290 = vrot.slane %v289, 4
    %v291 = vmax.f32 %v289, %v290
    %v292 = vrot.slane %v291, 2
    %v293 = vmax.f32 %v291, %v292
    %v294 = vrot.slane %v293, 1
    %v295 = vmax.f32 %v293, %v294
    %v296 = vsel %vm148, %v144, -inf
    %v297 = vrot.slane %v296, 4
    %v298 = vmax.f32 %v296, %v297
    %v299 = vrot.slane %v298, 2
    %v300 = vmax.f32 %v298, %v299
    %v301 = vrot.slane %v300, 1
    %v302 = vmax.f32 %v300, %v301
    %v303 = vsel %vm148, %v145, -inf
    %v304 = vrot.slane %v303, 4
    %v305 = vmax.f32 %v303, %v304
    %v306 = vrot.slane %v305, 2
    %v307 = vmax.f32 %v305, %v306
    %v308 = vrot.slane %v307, 1
    %v309 = vmax.f32 %v307, %v308
    %v310 = vsel %vm148, %v146, -inf
    %v311 = vrot.slane %v310, 4
    %v312 = vmax.f32 %v310, %v311
    %v313 = vrot.slane %v312, 2
    %v314 = vmax.f32 %v312, %v313
    %v315 = vrot.slane %v314, 1
    %v316 = vmax.f32 %v314, %v315
    %v317 = vsel %vm148, %v147, -inf
    %v318 = vrot.slane %v317, 4
    %v319 = vmax.f32 %v317, %v318
    %v320 = vrot.slane %v319, 2
    %v321 = vmax.f32 %v319, %v320
    %v322 = vrot.slane %v321, 1
    %v323 = vmax.f32 %v321, %v322
    %vm324 = vcmask 57344
    %325 = vst.msk [vmem:[#allocation5] sm:$0x1] %vm324, %v155
    %326 = vst.msk [vmem:[#allocation5 + $0x1] sm:$0x1] %vm324, %v162
    %327 = vst.msk [vmem:[#allocation5 + $0x2] sm:$0x1] %vm324, %v169
    %328 = vst.msk [vmem:[#allocation5 + $0x3] sm:$0x1] %vm324, %v176
    %329 = vst.msk [vmem:[#allocation5 + $0x4] sm:$0x1] %vm324, %v183
    %330 = vst.msk [vmem:[#allocation5 + $0x5] sm:$0x1] %vm324, %v190
    %331 = vst.msk [vmem:[#allocation5 + $0x6] sm:$0x1] %vm324, %v197
    %332 = vst.msk [vmem:[#allocation5 + $0x7] sm:$0x1] %vm324, %v204
    %333 = vst.msk [vmem:[#allocation5 + $0x8] sm:$0x1] %vm324, %v211
    %334 = vst.msk [vmem:[#allocation5 + $0x9] sm:$0x1] %vm324, %v218
    %335 = vst.msk [vmem:[#allocation5 + $0xa] sm:$0x1] %vm324, %v225
    %336 = vst.msk [vmem:[#allocation5 + $0xb] sm:$0x1] %vm324, %v232
    %337 = vst.msk [vmem:[#allocation5 + $0xc] sm:$0x1] %vm324, %v239
    %338 = vst.msk [vmem:[#allocation5 + $0xd] sm:$0x1] %vm324, %v246
    %339 = vst.msk [vmem:[#allocation5 + $0xe] sm:$0x1] %vm324, %v253
    %340 = vst.msk [vmem:[#allocation5 + $0xf] sm:$0x1] %vm324, %v260
    %341 = vst.msk [vmem:[#allocation5 + $0x10] sm:$0x1] %vm324, %v267
    %342 = vst.msk [vmem:[#allocation5 + $0x11] sm:$0x1] %vm324, %v274
    %343 = vst.msk [vmem:[#allocation5 + $0x12] sm:$0x1] %vm324, %v281
    %344 = vst.msk [vmem:[#allocation5 + $0x13] sm:$0x1] %vm324, %v288
    %345 = vst.msk [vmem:[#allocation5 + $0x14] sm:$0x1] %vm324, %v295
    %346 = vst.msk [vmem:[#allocation5 + $0x15] sm:$0x1] %vm324, %v302
    %347 = vst.msk [vmem:[#allocation5 + $0x16] sm:$0x1] %vm324, %v309
    %348 = vst.msk [vmem:[#allocation5 + $0x17] sm:$0x1] %vm324, %v316
    %349 = vst.msk [vmem:[#allocation5 + $0x18] sm:$0x1] %vm324, %v323
    // Predicated region
    $region10: #{tpu_custom_call.1} parent=1 // pred_check
      _
    $region11: #{tpu_custom_call.1} parent=1 // pred_check_branch
      %351 = sbr.rel (0) target = $region13
    $region12: #{tpu_custom_call.1} parent=1 // pred_region
      %s353 = ssub.s32 400, 400
      %354 = vsyncadd [#allocation4], %s353
      %s355 = sshll.u32 [#allocation5], 4
      %s356 = int_to_ptr.vmem [resolvable:$true] %s355
      %361 = dma.vmem_to_hbm [thread:$0]  %s356, 400, %s1, [#allocation4], 16, 16, 1
    $region13: #{tpu_custom_call.1} parent=1 // pred_fallthru
      _
    // Predicated region
    $region14: #{tpu_custom_call.1} parent=1 // pred_check
      _
    $region15: #{tpu_custom_call.1} parent=1 // pred_check_branch
      %363 = sbr.rel (0) target = $region17
    $region16: #{tpu_custom_call.1} parent=1 // pred_region
      %364 = dma.done [#allocation4], 400
    $region17: #{tpu_custom_call.1} parent=1 // pred_fallthru
      _
    %365 = vsyncpa [#allocation3], 1
    %366 = vsyncpa [#allocation4], 1

</llo_original>
